<compile_context>
chip_gen: v5e
topology: v5e:2x2
jax: 0.10.0
libtpu: 0.0.40
codegen_flags: <defaults>
</compile_context>

<pallas_src>
import functools

import jax
import jax.numpy as jnp
from jax.experimental import pallas as pl
from jax.experimental.pallas import tpu as pltpu


# ----------------------------------------------------------------------------
# Fused kernel: per batch element n
#   x_ref : (1, Cin, H*W)            VMEM  (channels on sublanes, pixels on lanes)
#   w1_ref: (mid, Cin)               VMEM  1x1 conv weights (torch (mid, Cin))
#   b1_ref: (mid, 1)                 VMEM
#   w2_ref: (Cout, k*k*half)         VMEM  kxk conv weights, columns in (ky,kx,ci) order
#   b2_ref: (Cout, 1)                VMEM
#   o_ref : (1, Cout, H*W)           VMEM
# ----------------------------------------------------------------------------
def _fused_glu_conv_kernel(x_ref, w1_ref, b1_ref, w2_ref, b2_ref, o_ref, *,
                           H, W, ksize, Cin, mid, Cout):
    half = mid // 2
    pad = (ksize - 1) // 2
    HW = H * W

    # Lane-position masks for replication-padding boundary fixes.
    lane = jax.lax.broadcasted_iota(jnp.int32, (1, HW), 1)
    col = lane % W
    first_row = lane < W
    last_row = lane >= (HW - W)
    first_col = col == 0
    last_col = col == (W - 1)

    # Clamped spatial reads realized as lane rolls (XLU) + boundary selects.
    # pltpu.roll follows jnp.roll semantics: out[i] = a[i - shift (mod HW)].
    def read_prev_row(a):   # a[max(y-1, 0), x]
        return jnp.where(first_row, a, pltpu.roll(a, shift=W, axis=1))

    def read_next_row(a):   # a[min(y+1, H-1), x]   (HW-W == -W rotation)
        return jnp.where(last_row, a, pltpu.roll(a, shift=HW - W, axis=1))

    def read_prev_col(a):   # a[y, max(x-1, 0)]
        return jnp.where(first_col, a, pltpu.roll(a, shift=1, axis=1))

    def read_next_col(a):   # a[y, min(x+1, W-1)]   (HW-1 == -1 rotation)
        return jnp.where(last_col, a, pltpu.roll(a, shift=HW - 1, axis=1))

    # ---- stage 1: 1x1 conv (MXU) + bias + GLU ----
    x = x_ref[0].astype(jnp.float32)                               # (Cin, HW)
    h = jnp.dot(w1_ref[...], x,
                preferred_element_type=jnp.float32) + b1_ref[...]  # (mid, HW)
    g = h[:half, :] * jax.nn.sigmoid(h[half:, :])                  # (half, HW)

    # ---- stage 2: replication-padded kxk conv (MXU) + leaky_relu(0.2) ----
    # Row-shifted stacks (shared across all kx).
    rowsh = {0: g}
    for s in range(1, pad + 1):
        rowsh[-s] = read_prev_row(rowsh[-(s - 1)])
        rowsh[s] = read_next_row(rowsh[s - 1])

    # Stack the k*k shifted tap planes into one (k*k*half, HW) MXU operand.
    # Row order is (ky, kx, ci), matching the wrapper's w2 column permutation.
    taps = []
    for ky in range(ksize):
        base = rowsh[ky - pad]
        colsh = {0: base}
        for s in range(1, pad + 1):
            colsh[-s] = read_prev_col(colsh[-(s - 1)])
            colsh[s] = read_next_col(colsh[s - 1])
        for kx in range(ksize):
            taps.append(colsh[kx - pad])
    taps = jnp.concatenate(taps, axis=0)                           # (k*k*half, HW)

    y = jnp.dot(w2_ref[...], taps,
                preferred_element_type=jnp.float32) + b2_ref[...]  # (Cout, HW)
    y = jnp.where(y >= 0.0, y, 0.2 * y)                            # leaky_relu(0.2)
    o_ref[0] = y.astype(o_ref.dtype)


# ----------------------------------------------------------------------------
# Wrapper
# ----------------------------------------------------------------------------
@functools.partial(jax.jit, static_argnames=("kernel_size", "padding"))
def glu_conv_mlp(x, w1_t, b1, w2_t, b2, *, kernel_size=3, padding=True):
    """x: NCHW. w1_t: (mid, Cin, 1, 1), w2_t: (Cout, mid//2, k, k) (torch layouts)."""
    N, Cin, H, W = x.shape
    mid = w1_t.shape[0]
    half = mid // 2
    Cout = w2_t.shape[0]
    assert kernel_size % 2 == 1, "odd kernel_size expected"
    pad = (kernel_size - 1) // 2
    HW = H * W
    kkhalf = kernel_size * kernel_size * half

    # Channels-on-sublanes / pixels-on-lanes: pure reshape, no transpose.
    x3 = x.reshape(N, Cin, HW)
    w1_2d = w1_t.reshape(mid, Cin).astype(jnp.float32)
    b1_2d = b1.reshape(mid, 1).astype(jnp.float32)
    # torch (Cout, half, k, k) -> (Cout, k, k, half) -> (Cout, k*k*half) so the
    # columns match the kernel's (ky, kx, ci) tap stacking order.
    w2_2d = jnp.transpose(w2_t, (0, 2, 3, 1)).reshape(Cout, kkhalf).astype(jnp.float32)
    b2_2d = b2.reshape(Cout, 1).astype(jnp.float32)

    kernel = functools.partial(
        _fused_glu_conv_kernel,
        H=H, W=W, ksize=kernel_size, Cin=Cin, mid=mid, Cout=Cout)

    flops = int(N * HW * (2 * mid * Cin + 2 * Cout * kkhalf + 4 * half + 3 * Cout))
    transcendentals = int(N * HW * half)
    bytes_accessed = int(N * HW * (Cin + Cout) * x.dtype.itemsize
                         + 4 * (mid * Cin + mid + Cout * kkhalf + Cout))

    y3 = pl.pallas_call(
        kernel,
        out_shape=jax.ShapeDtypeStruct((N, Cout, HW), x.dtype),
        grid=(N,),
        in_specs=[
            pl.BlockSpec((1, Cin, HW), lambda n: (n, 0, 0)),
            pl.BlockSpec((mid, Cin), lambda n: (0, 0)),
            pl.BlockSpec((mid, 1), lambda n: (0, 0)),
            pl.BlockSpec((Cout, kkhalf), lambda n: (0, 0)),
            pl.BlockSpec((Cout, 1), lambda n: (0, 0)),
        ],
        out_specs=pl.BlockSpec((1, Cout, HW), lambda n: (n, 0, 0)),
        compiler_params=pltpu.CompilerParams(
            dimension_semantics=("parallel",)),
        cost_estimate=pl.CostEstimate(flops=flops,
                                      transcendentals=transcendentals,
                                      bytes_accessed=bytes_accessed),
    )(x3, w1_2d, b1_2d, w2_2d, b2_2d)

    y = y3.reshape(N, Cout, H, W)
    if padding:
        return y
    # padding=False (nn.Identity pad): the valid conv equals the interior of the
    # replication-padded conv, so crop the border.
    return y[:, :, pad:H - pad, pad:W - pad]


# ----------------------------------------------------------------------------
# Pure-JAX reference (for correctness check only)
# ----------------------------------------------------------------------------
def reference(x, w1_t, b1, w2_t, b2, kernel_size=3):
    N, Cin, H, W = x.shape
    mid = w1_t.shape[0]
    half = mid // 2
    Cout = w2_t.shape[0]
    h = jnp.einsum("nchw,mc->nmhw", x, w1_t.reshape(mid, Cin)) \
        + b1[None, :, None, None]
    g = h[:, :half] * jax.nn.sigmoid(h[:, half:])
    pad = (kernel_size - 1) // 2
    gp = jnp.pad(g, ((0, 0), (0, 0), (pad, pad), (pad, pad)), mode="edge")
    out = jnp.zeros((N, Cout, H, W), jnp.float32) + b2[None, :, None, None]
    for dy in range(kernel_size):
        for dx in range(kernel_size):
            out = out + jnp.einsum("nchw,oc->nohw",
                                   gp[:, :, dy:dy + H, dx:dx + W],
                                   w2_t[:, :, dy, dx])
    return jnp.where(out >= 0, out, 0.2 * out)


if __name__ == "__main__":
    # GLUConvMLP(in_channels=4, out_channels=4, kernel_size=3, mlp_ratio=2)
    in_channels, out_channels, kernel_size, mlp_ratio = 4, 4, 3, 2
    mid = out_channels * mlp_ratio
    N, H, W = 2, 16, 16

    key = jax.random.PRNGKey(0)
    kx, kw1, kb1, kw2, kb2 = jax.random.split(key, 5)

    x = jax.random.normal(kx, (N, in_channels, H, W), jnp.float32)
    # torch Conv2d weight layouts, deterministic synthetic init
    w1_t = 0.1 * jax.random.normal(kw1, (mid, in_channels, 1, 1), jnp.float32)
    b1 = 0.1 * jax.random.normal(kb1, (mid,), jnp.float32)
    w2_t = 0.1 * jax.random.normal(kw2, (out_channels, mid // 2,
                                         kernel_size, kernel_size), jnp.float32)
    b2 = 0.1 * jax.random.normal(kb2, (out_channels,), jnp.float32)

    y = glu_conv_mlp(x, w1_t, b1, w2_t, b2,
                     kernel_size=kernel_size, padding=True)
    y = jax.block_until_ready(y)

    y_ref = reference(x, w1_t, b1, w2_t, b2, kernel_size=kernel_size)
    assert y.shape == (N, out_channels, H, W)
    assert jnp.allclose(y, y_ref, atol=1e-4, rtol=1e-4), "mismatch vs reference"
    print("KERNEL_OK")
</pallas_src>

<mosaic_0001>
module attributes {stable_mosaic.version = 11 : i64} {
  func.func @_fused_glu_conv_kernel(%arg0: i32, %arg1: memref<1x4x256xf32, #tpu.memory_space<vmem>>, %arg2: memref<8x4xf32, #tpu.memory_space<vmem>>, %arg3: memref<8x1xf32, #tpu.memory_space<vmem>>, %arg4: memref<4x36xf32, #tpu.memory_space<vmem>>, %arg5: memref<4x1xf32, #tpu.memory_space<vmem>>, %arg6: memref<1x4x256xf32, #tpu.memory_space<vmem>>) attributes {dimension_semantics = [#tpu.dimension_semantics<parallel>], iteration_bounds = array<i64: 2>, scalar_prefetch = 0 : i64, scratch_operands = 0 : i64, tpu.core_type = #tpu.core_type<tc>, window_params = [{transform_indices = @transform_0, window_bounds = array<i64: 1, 4, 256>}, {pipeline_mode = #tpu.pipeline_mode<synchronous>, transform_indices = @transform_1, window_bounds = array<i64: 8, 4>}, {pipeline_mode = #tpu.pipeline_mode<synchronous>, transform_indices = @transform_2, window_bounds = array<i64: 8, 1>}, {pipeline_mode = #tpu.pipeline_mode<synchronous>, transform_indices = @transform_3, window_bounds = array<i64: 4, 36>}, {pipeline_mode = #tpu.pipeline_mode<synchronous>, transform_indices = @transform_4, window_bounds = array<i64: 4, 1>}, {transform_indices = @transform_5, window_bounds = array<i64: 1, 4, 256>}]} {
    %0 = tpu.iota {dimensions = array<i32: 1>} : vector<1x256xi32>
    %c16_i32 = arith.constant 16 : i32
    %c0_i32 = arith.constant 0 : i32
    %1 = arith.cmpi eq, %c16_i32, %c0_i32 : i32
    %c1_i32 = arith.constant 1 : i32
    %2 = arith.select %1, %c1_i32, %c16_i32 : i32
    %3 = vector.broadcast %2 : i32 to vector<1x256xi32>
    %4 = arith.remsi %0, %3 : vector<1x256xi32>
    %c0_i32_0 = arith.constant 0 : i32
    %5 = vector.broadcast %c0_i32_0 : i32 to vector<1x256xi32>
    %6 = arith.cmpi ne, %4, %5 : vector<1x256xi32>
    %c0_i32_1 = arith.constant 0 : i32
    %7 = vector.broadcast %c0_i32_1 : i32 to vector<1x256xi32>
    %8 = arith.cmpi slt, %4, %7 : vector<1x256xi32>
    %c0_i32_2 = arith.constant 0 : i32
    %9 = arith.cmpi slt, %2, %c0_i32_2 : i32
    %10 = vector.broadcast %9 : i1 to vector<1x256xi1>
    %11 = vector.broadcast %10 : vector<1x256xi1> to vector<1x256xi1>
    %12 = arith.xori %8, %11 : vector<1x256xi1>
    %13 = arith.andi %12, %6 : vector<1x256xi1>
    %14 = vector.broadcast %2 : i32 to vector<1x256xi32>
    %15 = arith.addi %4, %14 : vector<1x256xi32>
    %16 = arith.select %13, %15, %4 : vector<1x256xi1>, vector<1x256xi32>
    %c16_i32_3 = arith.constant 16 : i32
    %17 = vector.broadcast %c16_i32_3 : i32 to vector<1x256xi32>
    %18 = arith.cmpi slt, %0, %17 : vector<1x256xi32>
    %c240_i32 = arith.constant 240 : i32
    %19 = vector.broadcast %c240_i32 : i32 to vector<1x256xi32>
    %20 = arith.cmpi sge, %0, %19 : vector<1x256xi32>
    %c0_i32_4 = arith.constant 0 : i32
    %21 = vector.broadcast %c0_i32_4 : i32 to vector<1x256xi32>
    %22 = arith.cmpi eq, %16, %21 : vector<1x256xi32>
    %c15_i32 = arith.constant 15 : i32
    %23 = vector.broadcast %c15_i32 : i32 to vector<1x256xi32>
    %24 = arith.cmpi eq, %16, %23 : vector<1x256xi32>
    %c0 = arith.constant 0 : index
    %c0_5 = arith.constant 0 : index
    %c0_6 = arith.constant 0 : index
    %25 = vector.load %arg1[%c0, %c0_5, %c0_6] : memref<1x4x256xf32, #tpu.memory_space<vmem>>, vector<1x4x256xf32>
    %26 = vector.shape_cast %25 : vector<1x4x256xf32> to vector<4x256xf32>
    %c0_7 = arith.constant 0 : index
    %c0_8 = arith.constant 0 : index
    %27 = vector.load %arg2[%c0_7, %c0_8] : memref<8x4xf32, #tpu.memory_space<vmem>>, vector<8x4xf32>
    %cst = arith.constant dense<0.000000e+00> : vector<8x256xf32>
    %28 = tpu.matmul %27, %26, %cst {dimension_numbers = #tpu.dot_dimension_numbers<[1], [0], [0], [1], [0, 0, 1, 1], [], []>} : vector<8x4xf32>, vector<4x256xf32>, vector<8x256xf32> -> vector<8x256xf32>
    %c0_9 = arith.constant 0 : index
    %c0_10 = arith.constant 0 : index
    %29 = vector.load %arg3[%c0_9, %c0_10] : memref<8x1xf32, #tpu.memory_space<vmem>>, vector<8x1xf32>
    %30 = vector.broadcast %29 : vector<8x1xf32> to vector<8x256xf32>
    %31 = arith.addf %28, %30 : vector<8x256xf32>
    %32 = vector.extract_strided_slice %31 {offsets = [0, 0], sizes = [4, 256], strides = [1, 1]} : vector<8x256xf32> to vector<4x256xf32>
    %33 = vector.extract_strided_slice %31 {offsets = [4, 0], sizes = [4, 256], strides = [1, 1]} : vector<8x256xf32> to vector<4x256xf32>
    %34 = arith.negf %33 : vector<4x256xf32>
    %35 = math.exp %34 : vector<4x256xf32>
    %cst_11 = arith.constant 1.000000e+00 : f32
    %36 = vector.broadcast %cst_11 : f32 to vector<4x256xf32>
    %37 = arith.addf %36, %35 : vector<4x256xf32>
    %38 = arith.divf %36, %37 : vector<4x256xf32>
    %39 = arith.mulf %32, %38 : vector<4x256xf32>
    %c16_i32_12 = arith.constant 16 : i32
    %40 = tpu.dynamic_rotate %39 by %c16_i32_12 dim 1 : vector<4x256xf32>, i32 -> vector<4x256xf32>
    %41 = vector.shape_cast %18 : vector<1x256xi1> to vector<1x256xi1>
    %42 = vector.broadcast %41 : vector<1x256xi1> to vector<4x256xi1>
    %43 = arith.select %42, %39, %40 : vector<4x256xi1>, vector<4x256xf32>
    %c240_i32_13 = arith.constant 240 : i32
    %44 = tpu.dynamic_rotate %39 by %c240_i32_13 dim 1 : vector<4x256xf32>, i32 -> vector<4x256xf32>
    %45 = vector.shape_cast %20 : vector<1x256xi1> to vector<1x256xi1>
    %46 = vector.broadcast %45 : vector<1x256xi1> to vector<4x256xi1>
    %47 = arith.select %46, %39, %44 : vector<4x256xi1>, vector<4x256xf32>
    %c1_i32_14 = arith.constant 1 : i32
    %48 = tpu.dynamic_rotate %43 by %c1_i32_14 dim 1 : vector<4x256xf32>, i32 -> vector<4x256xf32>
    %49 = vector.shape_cast %22 : vector<1x256xi1> to vector<1x256xi1>
    %50 = vector.broadcast %49 : vector<1x256xi1> to vector<4x256xi1>
    %51 = arith.select %50, %43, %48 : vector<4x256xi1>, vector<4x256xf32>
    %c255_i32 = arith.constant 255 : i32
    %52 = tpu.dynamic_rotate %43 by %c255_i32 dim 1 : vector<4x256xf32>, i32 -> vector<4x256xf32>
    %53 = vector.shape_cast %24 : vector<1x256xi1> to vector<1x256xi1>
    %54 = vector.broadcast %53 : vector<1x256xi1> to vector<4x256xi1>
    %55 = arith.select %54, %43, %52 : vector<4x256xi1>, vector<4x256xf32>
    %c1_i32_15 = arith.constant 1 : i32
    %56 = tpu.dynamic_rotate %39 by %c1_i32_15 dim 1 : vector<4x256xf32>, i32 -> vector<4x256xf32>
    %57 = vector.shape_cast %22 : vector<1x256xi1> to vector<1x256xi1>
    %58 = vector.broadcast %57 : vector<1x256xi1> to vector<4x256xi1>
    %59 = arith.select %58, %39, %56 : vector<4x256xi1>, vector<4x256xf32>
    %c255_i32_16 = arith.constant 255 : i32
    %60 = tpu.dynamic_rotate %39 by %c255_i32_16 dim 1 : vector<4x256xf32>, i32 -> vector<4x256xf32>
    %61 = vector.shape_cast %24 : vector<1x256xi1> to vector<1x256xi1>
    %62 = vector.broadcast %61 : vector<1x256xi1> to vector<4x256xi1>
    %63 = arith.select %62, %39, %60 : vector<4x256xi1>, vector<4x256xf32>
    %c1_i32_17 = arith.constant 1 : i32
    %64 = tpu.dynamic_rotate %47 by %c1_i32_17 dim 1 : vector<4x256xf32>, i32 -> vector<4x256xf32>
    %65 = vector.shape_cast %22 : vector<1x256xi1> to vector<1x256xi1>
    %66 = vector.broadcast %65 : vector<1x256xi1> to vector<4x256xi1>
    %67 = arith.select %66, %47, %64 : vector<4x256xi1>, vector<4x256xf32>
    %c255_i32_18 = arith.constant 255 : i32
    %68 = tpu.dynamic_rotate %47 by %c255_i32_18 dim 1 : vector<4x256xf32>, i32 -> vector<4x256xf32>
    %69 = vector.shape_cast %24 : vector<1x256xi1> to vector<1x256xi1>
    %70 = vector.broadcast %69 : vector<1x256xi1> to vector<4x256xi1>
    %71 = arith.select %70, %47, %68 : vector<4x256xi1>, vector<4x256xf32>
    %72 = tpu.concatenate %51, %43, %55, %59, %39, %63, %67, %47, %71 in 0 : vector<4x256xf32>, vector<4x256xf32>, vector<4x256xf32>, vector<4x256xf32>, vector<4x256xf32>, vector<4x256xf32>, vector<4x256xf32>, vector<4x256xf32>, vector<4x256xf32> -> vector<36x256xf32>
    %c0_19 = arith.constant 0 : index
    %c0_20 = arith.constant 0 : index
    %73 = vector.load %arg4[%c0_19, %c0_20] : memref<4x36xf32, #tpu.memory_space<vmem>>, vector<4x36xf32>
    %cst_21 = arith.constant dense<0.000000e+00> : vector<4x256xf32>
    %74 = tpu.matmul %73, %72, %cst_21 {dimension_numbers = #tpu.dot_dimension_numbers<[1], [0], [0], [1], [0, 0, 1, 1], [], []>} : vector<4x36xf32>, vector<36x256xf32>, vector<4x256xf32> -> vector<4x256xf32>
    %c0_22 = arith.constant 0 : index
    %c0_23 = arith.constant 0 : index
    %75 = vector.load %arg5[%c0_22, %c0_23] : memref<4x1xf32, #tpu.memory_space<vmem>>, vector<4x1xf32>
    %76 = vector.broadcast %75 : vector<4x1xf32> to vector<4x256xf32>
    %77 = arith.addf %74, %76 : vector<4x256xf32>
    %cst_24 = arith.constant 0.000000e+00 : f32
    %78 = vector.broadcast %cst_24 : f32 to vector<4x256xf32>
    %79 = arith.cmpf oge, %77, %78 : vector<4x256xf32>
    %cst_25 = arith.constant 2.000000e-01 : f32
    %80 = vector.broadcast %cst_25 : f32 to vector<4x256xf32>
    %81 = arith.mulf %80, %77 : vector<4x256xf32>
    %82 = arith.select %79, %77, %81 : vector<4x256xi1>, vector<4x256xf32>
    %c0_26 = arith.constant 0 : index
    %c0_27 = arith.constant 0 : index
    %c0_28 = arith.constant 0 : index
    %83 = vector.load %arg6[%c0_26, %c0_27, %c0_28] : memref<1x4x256xf32, #tpu.memory_space<vmem>>, vector<1x4x256xf32>
    %84 = vector.shape_cast %83 : vector<1x4x256xf32> to vector<4x256xf32>
    %85 = vector.shape_cast %82 : vector<4x256xf32> to vector<1x4x256xf32>
    tpu.vector_store %arg6[%c0_26, %c0_27, %c0_28], %85 {strides = array<i32>} : memref<1x4x256xf32, #tpu.memory_space<vmem>>, vector<1x4x256xf32>,
    return
  }
  func.func @transform_0(%arg0: i32) -> (i32, i32, i32) {
    %c0_i32 = arith.constant 0 : i32
    %c0_i32_0 = arith.constant 0 : i32
    %c0_i32_1 = arith.constant 0 : i32
    return %arg0, %c0_i32, %c0_i32_0 : i32, i32, i32
  }
  func.func @transform_1(%arg0: i32) -> (i32, i32) {
    %c0_i32 = arith.constant 0 : i32
    %c0_i32_0 = arith.constant 0 : i32
    %c0_i32_1 = arith.constant 0 : i32
    return %c0_i32, %c0_i32_0 : i32, i32
  }
  func.func @transform_2(%arg0: i32) -> (i32, i32) {
    %c0_i32 = arith.constant 0 : i32
    %c0_i32_0 = arith.constant 0 : i32
    %c0_i32_1 = arith.constant 0 : i32
    return %c0_i32, %c0_i32_0 : i32, i32
  }
  func.func @transform_3(%arg0: i32) -> (i32, i32) {
    %c0_i32 = arith.constant 0 : i32
    %c0_i32_0 = arith.constant 0 : i32
    %c0_i32_1 = arith.constant 0 : i32
    return %c0_i32, %c0_i32_0 : i32, i32
  }
  func.func @transform_4(%arg0: i32) -> (i32, i32) {
    %c0_i32 = arith.constant 0 : i32
    %c0_i32_0 = arith.constant 0 : i32
    %c0_i32_1 = arith.constant 0 : i32
    return %c0_i32, %c0_i32_0 : i32, i32
  }
  func.func @transform_5(%arg0: i32) -> (i32, i32, i32) {
    %c0_i32 = arith.constant 0 : i32
    %c0_i32_0 = arith.constant 0 : i32
    %c0_i32_1 = arith.constant 0 : i32
    return %arg0, %c0_i32, %c0_i32_0 : i32, i32, i32
  }
}

</mosaic_0001>

<llo_original>
// kernel: glu_conv_mlp.1
$region0: #{glu_conv_mlp.1}
  #allocation0 [shape = 'u32[]', space=smem, size = 0x4, offset = 0x4, fixed_abs, tag = 'smem constant byte address 0x4 - core index']
  #allocation1 [shape = 'u32[72,128]{1,0:T(1,128)}', space=vmem, size = 0x9000, scoped, tag = 'internal scratch']
  %s0 = inlined_call_operand.vmem [shape: f32[2,4,256], index: 0, kind: input, shape index: {}]
  %s1 = inlined_call_operand.vmem [shape: f32[8,4], index: 1, kind: input, shape index: {}]
  %s2 = inlined_call_operand.vmem [shape: f32[8,1], index: 2, kind: input, shape index: {}]
  %s3 = inlined_call_operand.vmem [shape: f32[4,36], index: 3, kind: input, shape index: {}]
  %s4 = inlined_call_operand.vmem [shape: f32[4,1], index: 4, kind: input, shape index: {}]
  %s5 = inlined_call_operand.vmem [shape: f32[2,4,256], index: 5, kind: output, shape index: {}]
  %s6 = sld [smem:[#allocation0]]
  $region53: #{glu_conv_mlp.1} parent=0
    _
  %s8 = ssub.s32 1, %s6
  %s9 = scalar_select 0, %s8, %s6
  loop: start=0, step=1, limit=4
  $region2: #{glu_conv_mlp.1} parent=0 // loop_pre_header
    _
  $region3: #{glu_conv_mlp.1} parent=0 // loop_header
    %s11 = sphi 0, %s15
    %p12 = scmp.ge.s32.totalorder %s11, 4
    %s21 = sphi 0, %s23
    %s24 = sphi 0, %s21
    %s25 = sphi 0, %s24
    %s41 = sphi 0, %s25
    %s45 = sphi 0, %s45
    %s47 = sphi 0, %s45
    %s48 = sphi 0, %s47
    %s62 = sphi 0, %s48
    %s66 = sphi 0, %s66
    %s68 = sphi 0, %s66
    %s69 = sphi 0, %s68
    %s83 = sphi 0, %s69
    %s87 = sphi 0, %s87
    %s89 = sphi 0, %s87
    %s90 = sphi 0, %s89
    %s104 = sphi 0, %s90
    %s108 = sphi 0, %s108
    %s110 = sphi 0, %s108
    %s111 = sphi 0, %s110
    %s125 = sphi 0, %s111
    %s131 = sphi 0, %s133
    %s134 = sphi 0, %s131
    %s135 = sphi 0, %s134
    %s151 = sphi 0, %s135
  $region4: #{glu_conv_mlp.1} parent=0 // loop_header_branch
    %14 = sbr.rel (%p12) target = $region8
  $region5: #{glu_conv_mlp.1} parent=0 // loop_body
    %s16 = ssub.s32 %s11, 1
    %s17 = ssub.s32 %s11, 2
    %s18 = sadd.s32 %s11, 1
    %s19 = ssub.s32 %s11, %s18
    %p20 = scmp.eq.s32.totalorder %s19, 0
    %s22 = sadd.s32 %s21, 1
    %s23 = scalar_select %p20, %s21, %s22
    %p26 = pneg %p20
    %p27 = scmp.eq.s32.totalorder %s11, 1
    %p28 = por %p26, %p27
    %p29 = scmp.ne.s32.totalorder %s21, %s24
    %p30 = scmp.eq.s32.totalorder %s11, 0
    %p31 = por %p29, %p30
    %p32 = scmp.ne.s32.totalorder %s21, %s24
    %p33 = scmp.eq.s32.totalorder %s16, 1
    %p34 = por %p32, %p33
    %p35 = scmp.ne.s32.totalorder %s24, %s25
    %p36 = scmp.eq.s32.totalorder %s16, 0
    %p37 = por %p35, %p36
    %p38 = scmp.ne.s32.totalorder %s24, %s25
    %p39 = scmp.eq.s32.totalorder %s17, 1
    %p40 = por %p38, %p39
    %p42 = scmp.ne.s32.totalorder %s25, %s41
    %p43 = scmp.eq.s32.totalorder %s17, 0
    %p44 = por %p42, %p43
    %s46 = sadd.s32 %s45, 1
    %p49 = scmp.eq.s32.totalorder %s11, 1
    %p50 = scmp.ne.s32.totalorder %s45, %s47
    %p51 = scmp.eq.s32.totalorder %s11, 0
    %p52 = por %p50, %p51
    %p53 = scmp.ne.s32.totalorder %s45, %s47
    %p54 = scmp.eq.s32.totalorder %s16, 1
    %p55 = por %p53, %p54
    %p56 = scmp.ne.s32.totalorder %s47, %s48
    %p57 = scmp.eq.s32.totalorder %s16, 0
    %p58 = por %p56, %p57
    %p59 = scmp.ne.s32.totalorder %s47, %s48
    %p60 = scmp.eq.s32.totalorder %s17, 1
    %p61 = por %p59, %p60
    %p63 = scmp.ne.s32.totalorder %s48, %s62
    %p64 = scmp.eq.s32.totalorder %s17, 0
    %p65 = por %p63, %p64
    %s67 = sadd.s32 %s66, 1
    %p70 = scmp.eq.s32.totalorder %s11, 1
    %p71 = scmp.ne.s32.totalorder %s66, %s68
    %p72 = scmp.eq.s32.totalorder %s11, 0
    %p73 = por %p71, %p72
    %p74 = scmp.ne.s32.totalorder %s66, %s68
    %p75 = scmp.eq.s32.totalorder %s16, 1
    %p76 = por %p74, %p75
    %p77 = scmp.ne.s32.totalorder %s68, %s69
    %p78 = scmp.eq.s32.totalorder %s16, 0
    %p79 = por %p77, %p78
    %p80 = scmp.ne.s32.totalorder %s68, %s69
    %p81 = scmp.eq.s32.totalorder %s17, 1
    %p82 = por %p80, %p81
    %p84 = scmp.ne.s32.totalorder %s69, %s83
    %p85 = scmp.eq.s32.totalorder %s17, 0
    %p86 = por %p84, %p85
    %s88 = sadd.s32 %s87, 1
    %p91 = scmp.eq.s32.totalorder %s11, 1
    %p92 = scmp.ne.s32.totalorder %s87, %s89
    %p93 = scmp.eq.s32.totalorder %s11, 0
    %p94 = por %p92, %p93
    %p95 = scmp.ne.s32.totalorder %s87, %s89
    %p96 = scmp.eq.s32.totalorder %s16, 1
    %p97 = por %p95, %p96
    %p98 = scmp.ne.s32.totalorder %s89, %s90
    %p99 = scmp.eq.s32.totalorder %s16, 0
    %p100 = por %p98, %p99
    %p101 = scmp.ne.s32.totalorder %s89, %s90
    %p102 = scmp.eq.s32.totalorder %s17, 1
    %p103 = por %p101, %p102
    %p105 = scmp.ne.s32.totalorder %s90, %s104
    %p106 = scmp.eq.s32.totalorder %s17, 0
    %p107 = por %p105, %p106
    %s109 = sadd.s32 %s108, 1
    %p112 = scmp.eq.s32.totalorder %s11, 1
    %p113 = scmp.ne.s32.totalorder %s108, %s110
    %p114 = scmp.eq.s32.totalorder %s11, 0
    %p115 = por %p113, %p114
    %p116 = scmp.ne.s32.totalorder %s108, %s110
    %p117 = scmp.eq.s32.totalorder %s16, 1
    %p118 = por %p116, %p117
    %p119 = scmp.ne.s32.totalorder %s110, %s111
    %p120 = scmp.eq.s32.totalorder %s16, 0
    %p121 = por %p119, %p120
    %p122 = scmp.ne.s32.totalorder %s110, %s111
    %p123 = scmp.eq.s32.totalorder %s17, 1
    %p124 = por %p122, %p123
    %p126 = scmp.ne.s32.totalorder %s111, %s125
    %p127 = scmp.eq.s32.totalorder %s17, 0
    %p128 = por %p126, %p127
    %s129 = ssub.s32 %s11, %s18
    %p130 = scmp.eq.s32.totalorder %s129, 0
    %s132 = sadd.s32 %s131, 1
    %s133 = scalar_select %p130, %s131, %s132
    %p136 = pneg %p130
    %p137 = scmp.eq.s32.totalorder %s11, 1
    %p138 = por %p136, %p137
    %p139 = scmp.ne.s32.totalorder %s131, %s134
    %p140 = scmp.eq.s32.totalorder %s11, 0
    %p141 = por %p139, %p140
    %p142 = scmp.ne.s32.totalorder %s131, %s134
    %p143 = scmp.eq.s32.totalorder %s16, 1
    %p144 = por %p142, %p143
    %p145 = scmp.ne.s32.totalorder %s134, %s135
    %p146 = scmp.eq.s32.totalorder %s16, 0
    %p147 = por %p145, %p146
    %p148 = scmp.ne.s32.totalorder %s134, %s135
    %p149 = scmp.eq.s32.totalorder %s17, 1
    %p150 = por %p148, %p149
    %p152 = scmp.ne.s32.totalorder %s135, %s151
    %p153 = scmp.eq.s32.totalorder %s17, 0
    %p154 = por %p152, %p153
    %p155 = scmp.le.s32.totalorder 1, %s11
    %p156 = scmp.lt.s32.totalorder %s11, 3
    %p157 = pnand %p155, %p156
    %p158 = pneg %p157
    // Predicated region
    $region9: #{glu_conv_mlp.1} parent=5 // pred_check
      _
    $region10: #{glu_conv_mlp.1} parent=5 // pred_check_branch
      %160 = sbr.rel (%p157) target = $region12
    $region11: #{glu_conv_mlp.1} parent=5 // pred_region
      %s161 = ssub.s32 %s11, 1
      // Predicated region
      $region13: #{glu_conv_mlp.1} parent=11 // pred_check
        %p162 = pneg %p58
      $region14: #{glu_conv_mlp.1} parent=11 // pred_check_branch
        %164 = sbr.rel (%p162) target = $region16
      $region15: #{glu_conv_mlp.1} parent=11 // pred_region
        _
      $region16: #{glu_conv_mlp.1} parent=11 // pred_fallthru
        _
      // Predicated region
      $region17: #{glu_conv_mlp.1} parent=11 // pred_check
        %p165 = pneg %p79
      $region18: #{glu_conv_mlp.1} parent=11 // pred_check_branch
        %167 = sbr.rel (%p165) target = $region20
      $region19: #{glu_conv_mlp.1} parent=11 // pred_region
        _
      $region20: #{glu_conv_mlp.1} parent=11 // pred_fallthru
        _
      // Predicated region
      $region21: #{glu_conv_mlp.1} parent=11 // pred_check
        %p168 = pneg %p100
      $region22: #{glu_conv_mlp.1} parent=11 // pred_check_branch
        %170 = sbr.rel (%p168) target = $region24
      $region23: #{glu_conv_mlp.1} parent=11 // pred_region
        _
      $region24: #{glu_conv_mlp.1} parent=11 // pred_fallthru
        _
      // Predicated region
      $region25: #{glu_conv_mlp.1} parent=11 // pred_check
        %p171 = pneg %p121
      $region26: #{glu_conv_mlp.1} parent=11 // pred_check_branch
        %173 = sbr.rel (%p171) target = $region28
      $region27: #{glu_conv_mlp.1} parent=11 // pred_region
        _
      $region28: #{glu_conv_mlp.1} parent=11 // pred_fallthru
        _
    $region12: #{glu_conv_mlp.1} parent=5 // pred_fallthru
      _
    %p174 = scmp.lt.s32.totalorder %s11, 2
    // Predicated region
    $region29: #{glu_conv_mlp.1} parent=5 // pred_check
      %p175 = pneg %p174
    $region30: #{glu_conv_mlp.1} parent=5 // pred_check_branch
      %177 = sbr.rel (%p175) target = $region32
    $region31: #{glu_conv_mlp.1} parent=5 // pred_region
      // Predicated region
      $region33: #{glu_conv_mlp.1} parent=31 // pred_check
        %p178 = pneg %p31
      $region34: #{glu_conv_mlp.1} parent=31 // pred_check_branch
        %180 = sbr.rel (%p178) target = $region36
      $region35: #{glu_conv_mlp.1} parent=31 // pred_region
        %p181 = scmp.lt.s32.totalorder %s11, 1
        %s182 = scalar_select %p181, %s11, 1
        %s183 = smul.addr %s182, 2
        %s184 = smul.addr %s183, 4
        %s185 = scalar_lea.vmem %s0, %s184
      $region36: #{glu_conv_mlp.1} parent=31 // pred_fallthru
        _
    $region32: #{glu_conv_mlp.1} parent=5 // pred_fallthru
      _
    %p186 = scmp.le.s32.totalorder 1, %s11
    %p187 = scmp.lt.s32.totalorder %s11, 3
    %p188 = pnand %p186, %p187
    %p189 = pneg %p188
    // Predicated region
    $region37: #{glu_conv_mlp.1} parent=5 // pred_check
      _
    $region38: #{glu_conv_mlp.1} parent=5 // pred_check_branch
      %191 = sbr.rel (%p188) target = $region40
    $region39: #{glu_conv_mlp.1} parent=5 // pred_region
      %s192 = ssub.s32 %s11, 1
      %p193 = scmp.lt.s32.totalorder %s16, 1
      %s194 = scalar_select %p193, %s16, 1
      %s195 = smul.addr %s194, 2
      %s196 = smul.addr %s195, 4
      %s197 = scalar_lea.vmem %s0, %s196
      %p198 = pneg %p37
      %p199 = pneg %p34
      %p200 = pneg %p58
      %p201 = pneg %p55
      %p202 = pneg %p79
      %p203 = pneg %p76
      %p204 = pneg %p100
      %p205 = pneg %p97
      %p206 = pneg %p121
      %p207 = pneg %p118
      %p208 = pneg %p147
      %p209 = pneg %p144
      %p210 = scmp.lt.s32.totalorder %s16, 1
      %s211 = scalar_select %p210, %s16, 1
      %s212 = smul.addr %s211, 2
      %s213 = smul.addr %s212, 4
      %s214 = scalar_lea.vmem %s5, %s213
      %p215 = scmp.lt.s32.totalorder %s16, 1
      %s216 = scalar_select %p215, %s16, 1
      %s217 = smul.addr %s216, 2
      %s218 = smul.addr %s217, 4
      %s219 = scalar_lea.vmem %s0, %s218
      %p220 = scmp.lt.s32.totalorder %s16, 1
      %s221 = scalar_select %p220, %s16, 1
      %s222 = smul.addr %s221, 2
      %s223 = smul.addr %s222, 4
      %s224 = scalar_lea.vmem %s5, %s223
      %v225 = vlaneseq
      %v226 = vand.u32 %v225, 127
      %v227 = vadd.s32 %v226, 128
      %vm228 = vcmp.lt.s32.totalorder %v226, 0
      %v229 = vsub.s32 0, %v226
      %v230 = vsel %vm228, %v229, %v226
      %v231 = vshrl.u32 %v230, 4
      %v232 = vand.u32 %v230, 15
      %v233 = vsub.s32 0, %v232
      %v234 = vsel %vm228, %v233, %v232
      %vm235 = vcmp.lt.s32.totalorder %v227, 0
      %v236 = vsub.s32 0, %v227
      %v237 = vsel %vm235, %v236, %v227
      %v238 = vshrl.u32 %v237, 4
      %v239 = vand.u32 %v237, 15
      %v240 = vsub.s32 0, %v239
      %v241 = vsel %vm235, %v240, %v239
      %vm242 = vcmp.ne.s32.totalorder %v234, 0
      %vm243 = vcmp.ne.s32.totalorder %v241, 0
      %vm244 = vcmp.lt.s32.totalorder %v234, 0
      %vm245 = vcmp.lt.s32.totalorder %v241, 0
      %vm246 = vmand %vm244, %vm242
      %vm247 = vmand %vm245, %vm243
      %v248 = vadd.s32 %v234, 16
      %v249 = vadd.s32 %v241, 16
      %v250 = vsel %vm246, %v248, %v234
      %v251 = vsel %vm247, %v249, %v241
      %vm252 = vcmp.lt.s32.totalorder %v226, 16
      %vm253 = vcmp.lt.s32.totalorder %v227, 16
      %vm254 = vcmp.ge.s32.totalorder %v226, 240
      %vm255 = vcmp.ge.s32.totalorder %v227, 240
      %vm256 = vcmp.eq.s32.totalorder %v250, 0
      %vm257 = vcmp.eq.s32.totalorder %v251, 0
      %vm258 = vcmp.eq.s32.totalorder %v250, 15
      %vm259 = vcmp.eq.s32.totalorder %v251, 15
      %v260 = vld [vmem:[%s219] sm:$0xff]
      %v261 = vld [vmem:[%s1] sm:$0xff]
      %v262 = vld [vmem:[%s2] sm:$0xff]
      %264 = vset.pattern.permute.xlu0 0
      %265 = vperm.xlu0 %264, %v262
      %v266 = vpop.permute.xlu0 %265
      %269 = vst [vmem:[#allocation1] ss:$2 sm:$0xff] %v260
      %v270 = vld.sshfl [vmem:[#allocation1] sm:$0xff pattern:$0x75316420]
      %v271 = vld.sshfl [vmem:[#allocation1 + $0x8] sm:$0xff pattern:$0x75316420]
      %vm272 = vcmask 31744
      %v274 = vsel %vm272, %v261, 0
      %vm276 = vcmask 1043456
      %v277 = vsel %vm276, %v270, 0
      %v279 = vsel %vm276, %v271, 0
      %281 = vmatpush.msra.mxu0 0.0
      %282 = vmatpush.msra.mxu0 0.0
      %283 = vmatpush.msra.mxu0 0.0
      %284 = vmatpush.msra.mxu0 0.0
      %285 = vmatpush.msra.mxu0 0.0
      %286 = vmatpush.msra.mxu0 0.0
      %287 = vmatpush.msra.mxu0 0.0
      %288 = vmatpush.msra.mxu0 0.0
      %289 = vmatpush.msra.mxu0 0.0
      %290 = vmatpush.msra.mxu0 0.0
      %291 = vmatpush.msra.mxu0 0.0
      %292 = vmatpush.msra.mxu0 0.0
      %293 = vmatpush.msra.mxu0 0.0
      %294 = vmatpush.msra.mxu0 0.0
      %295 = vmatpush.msra.mxu0 0.0
      %296 = vmatpush.msra.mxu0 %v277
      %297 = vmatmul.f32.gmra.mxu0 %v274
      %v298 = vpop.f32.mrf.mxu0
      %v299 = vadd.f32 %v266, %v298
      %300 = vdwg.mxu0
      %301 = vmatpush.msra.mxu0 0.0
      %302 = vmatpush.msra.mxu0 0.0
      %303 = vmatpush.msra.mxu0 0.0
      %304 = vmatpush.msra.mxu0 0.0
      %305 = vmatpush.msra.mxu0 0.0
      %306 = vmatpush.msra.mxu0 0.0
      %307 = vmatpush.msra.mxu0 0.0
      %308 = vmatpush.msra.mxu0 0.0
      %309 = vmatpush.msra.mxu0 0.0
      %310 = vmatpush.msra.mxu0 0.0
      %311 = vmatpush.msra.mxu0 0.0
      %312 = vmatpush.msra.mxu0 0.0
      %313 = vmatpush.msra.mxu0 0.0
      %314 = vmatpush.msra.mxu0 0.0
      %315 = vmatpush.msra.mxu0 0.0
      %316 = vmatpush.msra.mxu0 %v279
      %317 = vmatmul.f32.gmra.mxu0 %v274
      %v318 = vpop.f32.mrf.mxu0
      %v319 = vadd.f32 %v266, %v318
      %320 = vdwg.mxu0
      %v321 = vxor.u32 %v299, 2147483648
      %v322 = vxor.u32 %v319, 2147483648
      %v323 = vmul.f32 %v321, 1.442695
      %v324 = vpow.pop %v323
      %v325 = vmul.f32 %v322, 1.442695
      %v326 = vpow.pop %v325
      %v327 = vadd.f32 %v324, 1.0
      %v328 = vadd.f32 %v326, 1.0
      %v329 = vrcp.pop %v327
      %v330 = vmul.f32 %v327, %v329
      %v331 = vsub.f32 1.0, %v330
      %v332 = vmul.f32 %v329, %v331
      %v333 = vadd.f32 %v329, %v332
      %vm334 = vweird.f32 %v327
      %vm335 = vweird.f32 %v329
      %vm336 = vmor %vm334, %vm335
      %v337 = vsel %vm336, %v329, %v333
      %v338 = vand.u32 2147483647, %v327
      %vm339 = vcmp.eq.f32.partialorder %v338, 8.507059e+37
      %v340 = vand.u32 %v327, 2147483648
      %v341 = vor.u32 1.1754944e-38, %v340
      %v342 = vsel %vm339, %v341, %v337
      %v343 = vmul.f32 1.0, %v342
      %v344 = vrcp.pop %v328
      %v345 = vmul.f32 %v328, %v344
      %v346 = vsub.f32 1.0, %v345
      %v347 = vmul.f32 %v344, %v346
      %v348 = vadd.f32 %v344, %v347
      %vm349 = vweird.f32 %v328
      %vm350 = vweird.f32 %v344
      %vm351 = vmor %vm349, %vm350
      %v352 = vsel %vm351, %v344, %v348
      %v353 = vand.u32 2147483647, %v328
      %vm354 = vcmp.eq.f32.partialorder %v353, 8.507059e+37
      %v355 = vand.u32 %v328, 2147483648
      %v356 = vor.u32 1.1754944e-38, %v355
      %v357 = vsel %vm354, %v356, %v352
      %v358 = vmul.f32 1.0, %v357
      %v361 = vrot.slane %v343, 4
      %v362 = vrot.slane %v358, 4
      %v365 = vmul.f32 %v299, %v361
      %v366 = vmul.f32 %v319, %v362
      %367 = vrot.lane.b32.xlu0 %v365, 16
      %v368 = vpop.permute.xlu0 %367
      %369 = vrot.lane.b32.xlu0 %v366, 16
      %v370 = vpop.permute.xlu0 %369
      %v371 = vsel %vm252, %v368, %v370
      %v372 = vsel %vm252, %v370, %v368
      %v373 = vsel %vm252, 1, 0
      %v374 = vsel %vm253, 1, 0
      %vm375 = vcmp.eq.s32.totalorder %v373, 1
      %vm376 = vcmp.eq.s32.totalorder %v374, 1
      %v377 = vsel %vm375, %v365, %v372
      %v378 = vsel %vm376, %v366, %v371
      %379 = vrot.lane.b32.xlu0 %v365, 112
      %v380 = vpop.permute.xlu0 %379
      %381 = vrot.lane.b32.xlu0 %v366, 112
      %v382 = vpop.permute.xlu0 %381
      %vm383 = vcmp.lt.s32.totalorder %v226, 112
      %v384 = vsel %vm383, %v380, %v382
      %v385 = vsel %vm383, %v382, %v380
      %v386 = vsel %vm254, 1, 0
      %v387 = vsel %vm255, 1, 0
      %vm388 = vcmp.eq.s32.totalorder %v386, 1
      %vm389 = vcmp.eq.s32.totalorder %v387, 1
      %v390 = vsel %vm388, %v365, %v384
      %v391 = vsel %vm389, %v366, %v385
      %392 = vrot.lane.b32.xlu0 %v377, 1
      %v393 = vpop.permute.xlu0 %392
      %394 = vrot.lane.b32.xlu0 %v378, 1
      %v395 = vpop.permute.xlu0 %394
      %vm396 = vcmp.lt.s32.totalorder %v226, 1
      %v397 = vsel %vm396, %v393, %v395
      %v398 = vsel %vm396, %v395, %v393
      %v399 = vsel %vm256, 1, 0
      %v400 = vsel %vm257, 1, 0
      %vm401 = vcmp.eq.s32.totalorder %v399, 1
      %vm402 = vcmp.eq.s32.totalorder %v400, 1
      %v403 = vsel %vm401, %v377, %v398
      %v404 = vsel %vm402, %v378, %v397
      %405 = vrot.lane.b32.xlu0 %v377, 127
      %v406 = vpop.permute.xlu0 %405
      %407 = vrot.lane.b32.xlu0 %v378, 127
      %v408 = vpop.permute.xlu0 %407
      %vm409 = vcmp.lt.s32.totalorder %v226, 127
      %v410 = vsel %vm409, %v406, %v408
      %v411 = vsel %vm409, %v408, %v406
      %v412 = vsel %vm258, 1, 0
      %v413 = vsel %vm259, 1, 0
      %vm414 = vcmp.eq.s32.totalorder %v412, 1
      %vm415 = vcmp.eq.s32.totalorder %v413, 1
      %v416 = vsel %vm414, %v377, %v410
      %v417 = vsel %vm415, %v378, %v411
      %418 = vrot.lane.b32.xlu0 %v365, 1
      %v419 = vpop.permute.xlu0 %418
      %420 = vrot.lane.b32.xlu0 %v366, 1
      %v421 = vpop.permute.xlu0 %420
      %v422 = vsel %vm396, %v419, %v421
      %v423 = vsel %vm396, %v421, %v419
      %v424 = vsel %vm401, %v365, %v423
      %v425 = vsel %vm402, %v366, %v422
      %426 = vrot.lane.b32.xlu0 %v365, 127
      %v427 = vpop.permute.xlu0 %426
      %428 = vrot.lane.b32.xlu0 %v366, 127
      %v429 = vpop.permute.xlu0 %428
      %v430 = vsel %vm409, %v427, %v429
      %v431 = vsel %vm409, %v429, %v427
      %v432 = vsel %vm414, %v365, %v430
      %v433 = vsel %vm415, %v366, %v431
      %434 = vrot.lane.b32.xlu0 %v390, 1
      %v435 = vpop.permute.xlu0 %434
      %436 = vrot.lane.b32.xlu0 %v391, 1
      %v437 = vpop.permute.xlu0 %436
      %v438 = vsel %vm396, %v435, %v437
      %v439 = vsel %vm396, %v437, %v435
      %v440 = vsel %vm401, %v390, %v439
      %v441 = vsel %vm402, %v391, %v438
      %442 = vrot.lane.b32.xlu0 %v390, 127
      %v443 = vpop.permute.xlu0 %442
      %444 = vrot.lane.b32.xlu0 %v391, 127
      %v445 = vpop.permute.xlu0 %444
      %v446 = vsel %vm409, %v443, %v445
      %v447 = vsel %vm409, %v445, %v443
      %v448 = vsel %vm414, %v390, %v446
      %v449 = vsel %vm415, %v391, %v447
      %v452 = vrot.slane %v377, 4
      %v453 = vrot.slane %v378, 4
      %v458 = vrot.slane %v424, 4
      %v459 = vrot.slane %v425, 4
      %v464 = vrot.slane %v432, 4
      %v465 = vrot.slane %v433, 4
      %v470 = vrot.slane %v390, 4
      %v471 = vrot.slane %v391, 4
      %v474 = vsel %vm276, %v403, %v452
      %v475 = vsel %vm276, %v404, %v453
      %v476 = vsel %vm276, %v416, %v458
      %v477 = vsel %vm276, %v417, %v459
      %v478 = vsel %vm276, %v365, %v464
      %v479 = vsel %vm276, %v366, %v465
      %v480 = vsel %vm276, %v440, %v470
      %v481 = vsel %vm276, %v441, %v471
      %v482 = vld [vmem:[%s3] sm:$0xf]
      %v483 = vld [vmem:[%s4] sm:$0xf]
      %485 = vset.pattern.permute.xlu0 0
      %486 = vperm.xlu0 %485, %v483
      %v487 = vpop.permute.xlu0 %486
      %vm489 = vcmask 293888
      %v491 = vsel %vm489, %v482, 0
      %v494 = vsel %vm276, %v448, 0
      %v497 = vsel %vm276, %v449, 0
      %499 = vmatpush.msra.mxu0 0.0
      %500 = vmatpush.msra.mxu0 0.0
      %501 = vmatpush.msra.mxu0 0.0
      %502 = vmatpush.msra.mxu0 0.0
      %503 = vmatpush.msra.mxu0 0.0
      %504 = vmatpush.msra.mxu0 0.0
      %505 = vmatpush.msra.mxu0 0.0
      %506 = vmatpush.msra.mxu0 0.0
      %507 = vmatpush.msra.mxu0 0.0
      %508 = vmatpush.msra.mxu0 0.0
      %509 = vmatpush.msra.mxu0 0.0
      %510 = vmatpush.msra.mxu0 %v494
      %511 = vmatpush.msra.mxu0 %v480
      %512 = vmatpush.msra.mxu0 %v478
      %513 = vmatpush.msra.mxu0 %v476
      %514 = vmatpush.msra.mxu0 %v474
      %515 = vmatmul.f32.gmra.mxu0 %v491
      %v516 = vpop.f32.mrf.mxu0
      %v517 = vadd.f32 %v487, %v516
      %518 = vdwg.mxu0
      %519 = vmatpush.msra.mxu0 0.0
      %520 = vmatpush.msra.mxu0 0.0
      %521 = vmatpush.msra.mxu0 0.0
      %522 = vmatpush.msra.mxu0 0.0
      %523 = vmatpush.msra.mxu0 0.0
      %524 = vmatpush.msra.mxu0 0.0
      %525 = vmatpush.msra.mxu0 0.0
      %526 = vmatpush.msra.mxu0 0.0
      %527 = vmatpush.msra.mxu0 0.0
      %528 = vmatpush.msra.mxu0 0.0
      %529 = vmatpush.msra.mxu0 0.0
      %530 = vmatpush.msra.mxu0 %v497
      %531 = vmatpush.msra.mxu0 %v481
      %532 = vmatpush.msra.mxu0 %v479
      %533 = vmatpush.msra.mxu0 %v477
      %534 = vmatpush.msra.mxu0 %v475
      %535 = vmatmul.f32.gmra.mxu0 %v491
      %v536 = vpop.f32.mrf.mxu0
      %v537 = vadd.f32 %v487, %v536
      %538 = vdwg.mxu0
      %vm539 = vcmp.ge.f32.partialorder %v517, 0.0
      %vm540 = vcmp.ge.f32.partialorder %v537, 0.0
      %v541 = vmul.f32 %v517, 0.2
      %v542 = vmul.f32 %v537, 0.2
      %v543 = vsel %vm539, %v517, %v541
      %v544 = vsel %vm540, %v537, %v542
      %v547 = vrot.slane %v544, 4
      %v548 = vsel %vm276, %v543, %v547
      %550 = vst [vmem:[%s224] sm:$0xff] %v548
      %p551 = scmp.lt.s32.totalorder %s16, 1
      %s552 = scalar_select %p551, %s16, 1
      %s553 = smul.addr %s552, 2
      %s554 = smul.addr %s553, 4
      %s555 = scalar_lea.vmem %s5, %s554
      // Predicated region
      $region41: #{glu_conv_mlp.1} parent=39 // pred_check
        %p556 = pneg %p144
      $region42: #{glu_conv_mlp.1} parent=39 // pred_check_branch
        %558 = sbr.rel (%p556) target = $region44
      $region43: #{glu_conv_mlp.1} parent=39 // pred_region
        _
      $region44: #{glu_conv_mlp.1} parent=39 // pred_fallthru
        _
    $region40: #{glu_conv_mlp.1} parent=5 // pred_fallthru
      _
    %p559 = scmp.le.s32.totalorder 2, %s11
    // Predicated region
    $region45: #{glu_conv_mlp.1} parent=5 // pred_check
      %p560 = pneg %p559
    $region46: #{glu_conv_mlp.1} parent=5 // pred_check_branch
      %562 = sbr.rel (%p560) target = $region48
    $region47: #{glu_conv_mlp.1} parent=5 // pred_region
      %s563 = ssub.s32 %s11, 2
      // Predicated region
      $region49: #{glu_conv_mlp.1} parent=47 // pred_check
        %p564 = pneg %p150
      $region50: #{glu_conv_mlp.1} parent=47 // pred_check_branch
        %566 = sbr.rel (%p564) target = $region52
      $region51: #{glu_conv_mlp.1} parent=47 // pred_region
        %p567 = scmp.lt.s32.totalorder %s17, 1
        %s568 = scalar_select %p567, %s17, 1
        %s569 = smul.addr %s568, 2
        %s570 = smul.addr %s569, 4
        %s571 = scalar_lea.vmem %s5, %s570
      $region52: #{glu_conv_mlp.1} parent=47 // pred_fallthru
        _
    $region48: #{glu_conv_mlp.1} parent=5 // pred_fallthru
      _
  $region6: #{glu_conv_mlp.1} parent=0 // loop_footer
    %s15 = sadd.s32 1, %s11
  $region7: #{glu_conv_mlp.1} parent=0 // loop_footer_branch
    %10 = sbr.rel target = $region3
  $region8: #{glu_conv_mlp.1} parent=0 // loop_exit
    _

</llo_original>
